<compile_context>
chip_gen: v5e
topology: v5e:2x2
jax: 0.10.0
libtpu: 0.0.40
codegen_flags: <defaults>
</compile_context>

<pallas_src>
import jax
import jax.numpy as jnp
from jax.experimental import pallas as pl
from jax.experimental.pallas import tpu as pltpu


def _round_up(x, m):
    return (x + m - 1) // m * m


def _cdiv(a, b):
    return (a + b - 1) // b


def _critic_kernel(x_ref, w1_ref, b1_ref, w2_ref, b2_ref, w3_ref, b3_ref, o_ref):
    # x arrives f32 straight from HBM (no wrapper pad/astype pass); the bf16
    # downcast rides the VPU while the MXU is busy.
    x = x_ref[...].astype(jnp.bfloat16)                                   # (TB, D)
    # Layer 1: bf16 MXU matmul, f32 accumulation; bias + ReLU in f32 on the VPU.
    h1 = jnp.dot(x, w1_ref[...], preferred_element_type=jnp.float32)     # (TB, 128)
    h1 = jnp.maximum(h1 + b1_ref[...], 0.0)
    # Layer 2.
    h2 = jnp.dot(h1.astype(jnp.bfloat16), w2_ref[...],
                 preferred_element_type=jnp.float32)                      # (TB, 128)
    h2 = jnp.maximum(h2 + b2_ref[...], 0.0)
    # Layer 3 (value head): plain bf16 (TB,128)@(128,1) matmul on the MXU.
    v = jnp.dot(h2.astype(jnp.bfloat16), w3_ref[...],
                preferred_element_type=jnp.float32)                       # (TB, 1)
    o_ref[...] = (v + b3_ref[0, 0]).astype(o_ref.dtype)


def ppo_critic_forward(x, params, *, block_b=2048):
    """x: (B, state_dim) f32 (left untouched in HBM).
    params: dict with w1,b1,w2,b2,w3,b3 (W stored as (in, out))."""
    B, D = x.shape
    w1, b1 = params["w1"], params["b1"]
    w2, b2 = params["w2"], params["b2"]
    w3, b3 = params["w3"], params["b3"]
    H1, H2 = w1.shape[1], w2.shape[1]

    # --- batch tile selection -------------------------------------------------
    block_b = max(128, _round_up(block_b, 128))
    tb = min(block_b, _round_up(B, 128))
    # v7x has 2 TensorCores; the parallel grid axis is the only thing sharding
    # work across them, so guarantee >= 2 tiles when the batch is big enough.
    if B > 128 and _cdiv(B, tb) < 2:
        tb = max(128, _round_up(_cdiv(B, 2), 128))
    num_tiles = _cdiv(B, tb)

    # --- one-time (tiny) parameter prep; x itself is not touched ---------------
    w1c = w1.astype(jnp.bfloat16)
    w2c = w2.astype(jnp.bfloat16)
    w3c = w3.reshape(H2, 1).astype(jnp.bfloat16)
    b1c = b1.reshape(1, H1).astype(jnp.float32)
    b2c = b2.reshape(1, H2).astype(jnp.float32)
    b3c = b3.reshape(1, 1).astype(jnp.float32)

    # --- VMEM budget (v5e default scope is only 16 MiB; v7x physical is 64 MiB) -
    vmem_est = (2 * tb * D * 4          # double-buffered f32 x tiles
                + 2 * tb * 4            # double-buffered (tb,1) output column
                + 6 * tb * H1 * 4       # h1/h2 f32 + bf16 temporaries (slack)
                + 2 * 4 * (D * H1 + H1 * H2 + H2 + 2 * H1 + H2 + 1))
    vmem_limit = int(min(max(vmem_est + (4 << 20), 32 << 20), 64 << 20))

    # --- advisory cost estimate for XLA's scheduler ----------------------------
    flops = 2 * B * (D * H1 + H1 * H2 + H2)
    bytes_accessed = (B * D * 4 + B * 4
                      + D * H1 * 2 + H1 * H2 * 2 + H2 * 2
                      + (H1 + H2 + 1) * 4)
    cost = pl.CostEstimate(flops=flops, transcendentals=0,
                           bytes_accessed=bytes_accessed)

    def const(shape):
        return pl.BlockSpec(shape, lambda i: (0,) * len(shape))

    out = pl.pallas_call(
        _critic_kernel,
        out_shape=jax.ShapeDtypeStruct((B, 1), jnp.float32),
        grid_spec=pltpu.PrefetchScalarGridSpec(
            num_scalar_prefetch=0,
            grid=(num_tiles,),
            in_specs=[
                pl.BlockSpec((tb, D), lambda i: (i, 0)),        # x tile (f32, pipelined)
                const(w1c.shape), const(b1c.shape),             # weights stay resident
                const(w2c.shape), const(b2c.shape),
                const(w3c.shape),
                pl.BlockSpec(memory_space=pltpu.MemorySpace.SMEM),  # scalar b3
            ],
            out_specs=pl.BlockSpec((tb, 1), lambda i: (i, 0)),
        ),
        compiler_params=pltpu.CompilerParams(
            dimension_semantics=("parallel",),                  # megacore on v7x
            vmem_limit_bytes=vmem_limit,
        ),
        cost_estimate=cost,
    )(x, w1c, b1c, w2c, b2c, w3c, b3c)

    return out


def init_params(key, state_dim, hidden=128):
    """Deterministic synthetic init (matches the PyTorch module's shapes)."""
    ks = jax.random.split(key, 6)

    def lin(kw, kb, fan_in, fan_out):
        bound = 1.0 / jnp.sqrt(fan_in)
        w = jax.random.uniform(kw, (fan_in, fan_out), jnp.float32, -bound, bound)
        b = jax.random.uniform(kb, (1, fan_out), jnp.float32, -bound, bound)
        return w, b

    w1, b1 = lin(ks[0], ks[1], state_dim, hidden)
    w2, b2 = lin(ks[2], ks[3], hidden, hidden)
    w3, b3 = lin(ks[4], ks[5], hidden, 1)
    return {"w1": w1, "b1": b1, "w2": w2, "b2": b2, "w3": w3, "b3": b3}


def _reference(x, p):
    h1 = jnp.maximum(x @ p["w1"] + p["b1"], 0.0)
    h2 = jnp.maximum(h1 @ p["w2"] + p["b2"], 0.0)
    return h2 @ p["w3"] + p["b3"]


if __name__ == "__main__":
    key = jax.random.PRNGKey(0)
    k_x, k_p, k_x2 = jax.random.split(key, 3)

    B, STATE_DIM = 8, 32
    params = init_params(k_p, STATE_DIM)

    # Small-shape check (single partial tile).
    x = jax.random.normal(k_x, (B, STATE_DIM), jnp.float32)
    out = jax.block_until_ready(ppo_critic_forward(x, params))
    ref = _reference(x, params)
    assert out.shape == (B, 1), out.shape
    assert jnp.allclose(out, ref, atol=5e-2, rtol=5e-2), "mismatch vs reference (B=8)"

    # Ragged batch, default big tile: forces the >=2-tile split (256-row tiles,
    # last one partial/masked).
    B2 = 300
    x2 = jax.random.normal(k_x2, (B2, STATE_DIM), jnp.float32)
    out2 = jax.block_until_ready(ppo_critic_forward(x2, params))
    ref2 = _reference(x2, params)
    assert out2.shape == (B2, 1), out2.shape
    assert jnp.allclose(out2, ref2, atol=5e-2, rtol=5e-2), "mismatch vs reference (B=300)"

    # Explicit small tile: 3 grid steps, last block ragged.
    out3 = jax.block_until_ready(ppo_critic_forward(x2, params, block_b=128))
    assert out3.shape == (B2, 1), out3.shape
    assert jnp.allclose(out3, ref2, atol=5e-2, rtol=5e-2), "mismatch vs reference (tb=128)"

    print("KERNEL_OK")
</pallas_src>

<mosaic_0001>
module attributes {stable_mosaic.version = 11 : i64} {
  func.func @_critic_kernel(%arg0: i32, %arg1: memref<128x32xf32, #tpu.memory_space<vmem>>, %arg2: memref<32x128xbf16, #tpu.memory_space<vmem>>, %arg3: memref<1x128xf32, #tpu.memory_space<vmem>>, %arg4: memref<128x128xbf16, #tpu.memory_space<vmem>>, %arg5: memref<1x128xf32, #tpu.memory_space<vmem>>, %arg6: memref<128x1xbf16, #tpu.memory_space<vmem>>, %arg7: memref<1x1xf32, #tpu.memory_space<smem>>, %arg8: memref<128x1xf32, #tpu.memory_space<vmem>>) attributes {dimension_semantics = [#tpu.dimension_semantics<parallel>], iteration_bounds = array<i64: 1>, scalar_prefetch = 0 : i64, scratch_operands = 0 : i64, tpu.core_type = #tpu.core_type<tc>, window_params = [{transform_indices = @transform_0, window_bounds = array<i64: 128, 32>}, {pipeline_mode = #tpu.pipeline_mode<synchronous>, transform_indices = @transform_1, window_bounds = array<i64: 32, 128>}, {pipeline_mode = #tpu.pipeline_mode<synchronous>, transform_indices = @transform_2, window_bounds = array<i64: 1, 128>}, {pipeline_mode = #tpu.pipeline_mode<synchronous>, transform_indices = @transform_3, window_bounds = array<i64: 128, 128>}, {pipeline_mode = #tpu.pipeline_mode<synchronous>, transform_indices = @transform_4, window_bounds = array<i64: 1, 128>}, {pipeline_mode = #tpu.pipeline_mode<synchronous>, transform_indices = @transform_5, window_bounds = array<i64: 128, 1>}, {transform_indices = @transform_6, window_bounds = array<i64: 1, 1>}, {transform_indices = @transform_7, window_bounds = array<i64: 128, 1>}]} {
    %c0 = arith.constant 0 : index
    %c0_0 = arith.constant 0 : index
    %0 = vector.load %arg1[%c0, %c0_0] : memref<128x32xf32, #tpu.memory_space<vmem>>, vector<128x32xf32>
    %1 = arith.truncf %0 : vector<128x32xf32> to vector<128x32xbf16>
    %c0_1 = arith.constant 0 : index
    %c0_2 = arith.constant 0 : index
    %2 = vector.load %arg2[%c0_1, %c0_2] : memref<32x128xbf16, #tpu.memory_space<vmem>>, vector<32x128xbf16>
    %cst = arith.constant dense<0.000000e+00> : vector<128x128xf32>
    %3 = tpu.matmul %1, %2, %cst {dimension_numbers = #tpu.dot_dimension_numbers<[1], [0], [0], [1], [0, 0, 1, 1], [], []>} : vector<128x32xbf16>, vector<32x128xbf16>, vector<128x128xf32> -> vector<128x128xf32>
    %c0_3 = arith.constant 0 : index
    %c0_4 = arith.constant 0 : index
    %4 = vector.load %arg3[%c0_3, %c0_4] : memref<1x128xf32, #tpu.memory_space<vmem>>, vector<1x128xf32>
    %5 = vector.broadcast %4 : vector<1x128xf32> to vector<128x128xf32>
    %6 = arith.addf %3, %5 : vector<128x128xf32>
    %cst_5 = arith.constant 0.000000e+00 : f32
    %7 = vector.broadcast %cst_5 : f32 to vector<128x128xf32>
    %8 = arith.maximumf %6, %7 : vector<128x128xf32>
    %9 = arith.truncf %8 : vector<128x128xf32> to vector<128x128xbf16>
    %c0_6 = arith.constant 0 : index
    %c0_7 = arith.constant 0 : index
    %10 = vector.load %arg4[%c0_6, %c0_7] : memref<128x128xbf16, #tpu.memory_space<vmem>>, vector<128x128xbf16>
    %cst_8 = arith.constant dense<0.000000e+00> : vector<128x128xf32>
    %11 = tpu.matmul %9, %10, %cst_8 {dimension_numbers = #tpu.dot_dimension_numbers<[1], [0], [0], [1], [0, 0, 1, 1], [], []>} : vector<128x128xbf16>, vector<128x128xbf16>, vector<128x128xf32> -> vector<128x128xf32>
    %c0_9 = arith.constant 0 : index
    %c0_10 = arith.constant 0 : index
    %12 = vector.load %arg5[%c0_9, %c0_10] : memref<1x128xf32, #tpu.memory_space<vmem>>, vector<1x128xf32>
    %13 = vector.broadcast %12 : vector<1x128xf32> to vector<128x128xf32>
    %14 = arith.addf %11, %13 : vector<128x128xf32>
    %cst_11 = arith.constant 0.000000e+00 : f32
    %15 = vector.broadcast %cst_11 : f32 to vector<128x128xf32>
    %16 = arith.maximumf %14, %15 : vector<128x128xf32>
    %17 = arith.truncf %16 : vector<128x128xf32> to vector<128x128xbf16>
    %c0_12 = arith.constant 0 : index
    %c0_13 = arith.constant 0 : index
    %18 = vector.load %arg6[%c0_12, %c0_13] : memref<128x1xbf16, #tpu.memory_space<vmem>>, vector<128x1xbf16>
    %cst_14 = arith.constant dense<0.000000e+00> : vector<128x1xf32>
    %19 = tpu.matmul %17, %18, %cst_14 {dimension_numbers = #tpu.dot_dimension_numbers<[1], [0], [0], [1], [0, 0, 1, 1], [], []>} : vector<128x128xbf16>, vector<128x1xbf16>, vector<128x1xf32> -> vector<128x1xf32>
    %c0_15 = arith.constant 0 : index
    %c0_16 = arith.constant 0 : index
    %20 = memref.load %arg7[%c0_15, %c0_16] : memref<1x1xf32, #tpu.memory_space<smem>>
    %21 = vector.broadcast %20 : f32 to vector<128x1xf32>
    %22 = arith.addf %19, %21 : vector<128x1xf32>
    %c0_17 = arith.constant 0 : index
    %c0_18 = arith.constant 0 : index
    %23 = vector.load %arg8[%c0_17, %c0_18] : memref<128x1xf32, #tpu.memory_space<vmem>>, vector<128x1xf32>
    tpu.vector_store %arg8[%c0_17, %c0_18], %22 {strides = array<i32>} : memref<128x1xf32, #tpu.memory_space<vmem>>, vector<128x1xf32>,
    return
  }
  func.func @transform_0(%arg0: i32) -> (i32, i32) {
    %c0_i32 = arith.constant 0 : i32
    %c0_i32_0 = arith.constant 0 : i32
    return %arg0, %c0_i32 : i32, i32
  }
  func.func @transform_1(%arg0: i32) -> (i32, i32) {
    %c0_i32 = arith.constant 0 : i32
    %c0_i32_0 = arith.constant 0 : i32
    %c0_i32_1 = arith.constant 0 : i32
    return %c0_i32, %c0_i32_0 : i32, i32
  }
  func.func @transform_2(%arg0: i32) -> (i32, i32) {
    %c0_i32 = arith.constant 0 : i32
    %c0_i32_0 = arith.constant 0 : i32
    %c0_i32_1 = arith.constant 0 : i32
    return %c0_i32, %c0_i32_0 : i32, i32
  }
  func.func @transform_3(%arg0: i32) -> (i32, i32) {
    %c0_i32 = arith.constant 0 : i32
    %c0_i32_0 = arith.constant 0 : i32
    %c0_i32_1 = arith.constant 0 : i32
    return %c0_i32, %c0_i32_0 : i32, i32
  }
  func.func @transform_4(%arg0: i32) -> (i32, i32) {
    %c0_i32 = arith.constant 0 : i32
    %c0_i32_0 = arith.constant 0 : i32
    %c0_i32_1 = arith.constant 0 : i32
    return %c0_i32, %c0_i32_0 : i32, i32
  }
  func.func @transform_5(%arg0: i32) -> (i32, i32) {
    %c0_i32 = arith.constant 0 : i32
    %c0_i32_0 = arith.constant 0 : i32
    %c0_i32_1 = arith.constant 0 : i32
    return %c0_i32, %c0_i32_0 : i32, i32
  }
  func.func @transform_6(%arg0: i32) -> (i32, i32) {
    %c0_i32 = arith.constant 0 : i32
    %c0_i32_0 = arith.constant 0 : i32
    %c0_i32_1 = arith.constant 0 : i32
    return %c0_i32, %c0_i32_0 : i32, i32
  }
  func.func @transform_7(%arg0: i32) -> (i32, i32) {
    %c0_i32 = arith.constant 0 : i32
    %c0_i32_0 = arith.constant 0 : i32
    return %arg0, %c0_i32 : i32, i32
  }
}

</mosaic_0001>

<llo_original>
// kernel: tpu_custom_call.1
$region0: #{tpu_custom_call.1}
  #allocation0 [shape = 'u32[]', space=smem, size = 0x4, offset = 0x4, fixed_abs, tag = 'smem constant byte address 0x4 - core index']
  #allocation1 [shape = 'u32[72,128]{1,0:T(1,128)}', space=vmem, size = 0x9000, scoped, tag = 'internal scratch']
  #allocation2 [shape = 'f32[1,1]{1,0:T(1,128)S(6)}', space=smem, size = 0x200, scoped, tag = 'scoped memory for tpu_custom_call.1']
  %s0 = inlined_call_operand.hbm [shape: f32[8,32], index: 0, kind: input, shape index: {}]
  %s1 = inlined_call_operand.hbm [shape: bf16[32,128], index: 1, kind: input, shape index: {}]
  %s2 = inlined_call_operand.vmem [shape: f32[1,128], index: 2, kind: input, shape index: {}]
  %s3 = inlined_call_operand.vmem [shape: bf16[128,128], index: 3, kind: input, shape index: {}]
  %s4 = inlined_call_operand.vmem [shape: f32[1,128], index: 4, kind: input, shape index: {}]
  %s5 = inlined_call_operand.vmem [shape: bf16[128,1], index: 5, kind: input, shape index: {}]
  %s6 = inlined_call_operand.<no memory space> [shape: f32[1,1], index: 6, kind: input, shape index: {}]
  %s7 = inlined_call_operand.vmem [shape: f32[8,1], index: 7, kind: output, shape index: {}]
  %s8 = sld [smem:[#allocation0]]
  $region80: #{tpu_custom_call.1} parent=0
    _
  %s10 = ssub.s32 1, %s8
  %s11 = scalar_select 0, %s10, %s8
  %12 = sst [smem:[#allocation2]] %s6
  $region1: #{tpu_custom_call.1} parent=0
    #allocation3 [shape = 'u8[65536]{0}', space=vmem, size = 0x10000, scoped, tag = 'input window, operand 0, single buffered']
    #allocation4 [shape = 's32[1]{0}', space=sflag, size = 0x4, scoped, tag = 'scoped memory for tpu_custom_call.1']
    #allocation5 [shape = 'u8[8192]{0}', space=vmem, size = 0x2000, scoped, tag = 'input window, operand 1, single buffered']
    #allocation6 [shape = 's32[1]{0}', space=sflag, size = 0x4, scoped, tag = 'scoped memory for tpu_custom_call.1']
    #allocation7 [shape = 'u8[65536]{0}', space=vmem, size = 0x10000, scoped, tag = 'output window, operand 0, single buffered']
    %13 = vsyncpa [#allocation4], 0
    %14 = vsyncpa [#allocation6], 0
    // Predicated region
    $region2: #{tpu_custom_call.1} parent=1 // pred_check
      _
    $region3: #{tpu_custom_call.1} parent=1 // pred_check_branch
      %16 = sbr.rel (0) target = $region5
    $region4: #{tpu_custom_call.1} parent=1 // pred_region
      %18 = vsyncadd [#allocation4], 1920
      %s19 = sshll.u32 %s0, 4
      %s20 = int_to_ptr.hbm [resolvable:$true] %s19
      %s21 = sshll.u32 [#allocation3], 4
      %s22 = int_to_ptr.vmem [resolvable:$true] %s21
      %27 = dma.hbm_to_vmem [thread:$0]  %s20, 128, %s22, [#allocation4], 128, 128, 8
    $region5: #{tpu_custom_call.1} parent=1 // pred_fallthru
      _
    // Predicated region
    $region6: #{tpu_custom_call.1} parent=1 // pred_check
      _
    $region7: #{tpu_custom_call.1} parent=1 // pred_check_branch
      %29 = sbr.rel (0) target = $region9
    $region8: #{tpu_custom_call.1} parent=1 // pred_region
      %31 = vsyncadd [#allocation6], 0
      %s32 = sshll.u32 %s1, 4
      %s33 = int_to_ptr.hbm [resolvable:$true] %s32
      %s34 = sshll.u32 [#allocation5], 4
      %s35 = int_to_ptr.vmem [resolvable:$true] %s34
      %40 = dma.hbm_to_vmem [thread:$0]  %s33, 256, %s35, [#allocation6], 64, 64, 4
    $region9: #{tpu_custom_call.1} parent=1 // pred_fallthru
      _
    // Predicated region
    $region10: #{tpu_custom_call.1} parent=1 // pred_check
      _
    $region11: #{tpu_custom_call.1} parent=1 // pred_check_branch
      %42 = sbr.rel (0) target = $region13
    $region12: #{tpu_custom_call.1} parent=1 // pred_region
      _
    $region13: #{tpu_custom_call.1} parent=1 // pred_fallthru
      _
    // Predicated region
    $region14: #{tpu_custom_call.1} parent=1 // pred_check
      _
    $region15: #{tpu_custom_call.1} parent=1 // pred_check_branch
      %44 = sbr.rel (0) target = $region17
    $region16: #{tpu_custom_call.1} parent=1 // pred_region
      _
    $region17: #{tpu_custom_call.1} parent=1 // pred_fallthru
      _
    // Predicated region
    $region18: #{tpu_custom_call.1} parent=1 // pred_check
      _
    $region19: #{tpu_custom_call.1} parent=1 // pred_check_branch
      %46 = sbr.rel (0) target = $region21
    $region20: #{tpu_custom_call.1} parent=1 // pred_region
      _
    $region21: #{tpu_custom_call.1} parent=1 // pred_fallthru
      _
    // Predicated region
    $region22: #{tpu_custom_call.1} parent=1 // pred_check
      _
    $region23: #{tpu_custom_call.1} parent=1 // pred_check_branch
      %48 = sbr.rel (0) target = $region25
    $region24: #{tpu_custom_call.1} parent=1 // pred_region
      _
    $region25: #{tpu_custom_call.1} parent=1 // pred_fallthru
      _
    // Predicated region
    $region26: #{tpu_custom_call.1} parent=1 // pred_check
      _
    $region27: #{tpu_custom_call.1} parent=1 // pred_check_branch
      %50 = sbr.rel (0) target = $region29
    $region28: #{tpu_custom_call.1} parent=1 // pred_region
      _
    $region29: #{tpu_custom_call.1} parent=1 // pred_fallthru
      _
    // Predicated region
    $region30: #{tpu_custom_call.1} parent=1 // pred_check
      _
    $region31: #{tpu_custom_call.1} parent=1 // pred_check_branch
      %52 = sbr.rel (0) target = $region33
    $region32: #{tpu_custom_call.1} parent=1 // pred_region
      %54 = dma.done [#allocation4], 2048
    $region33: #{tpu_custom_call.1} parent=1 // pred_fallthru
      _
    // Predicated region
    $region34: #{tpu_custom_call.1} parent=1 // pred_check
      _
    $region35: #{tpu_custom_call.1} parent=1 // pred_check_branch
      %56 = sbr.rel (0) target = $region37
    $region36: #{tpu_custom_call.1} parent=1 // pred_region
      %58 = dma.done [#allocation6], 256
    $region37: #{tpu_custom_call.1} parent=1 // pred_fallthru
      _
    %v60 = vld [vmem:[#allocation3] sm:$0xff]
    %v61 = vld [vmem:[#allocation3 + $0x8] sm:$0xff]
    %v62 = vld [vmem:[#allocation3 + $0x10] sm:$0xff]
    %v63 = vld [vmem:[#allocation3 + $0x18] sm:$0xff]
    %v64 = vld [vmem:[#allocation3 + $0x20] sm:$0xff]
    %v65 = vld [vmem:[#allocation3 + $0x28] sm:$0xff]
    %v66 = vld [vmem:[#allocation3 + $0x30] sm:$0xff]
    %v67 = vld [vmem:[#allocation3 + $0x38] sm:$0xff]
    %v68 = vld [vmem:[#allocation3 + $0x40] sm:$0xff]
    %v69 = vld [vmem:[#allocation3 + $0x48] sm:$0xff]
    %v70 = vld [vmem:[#allocation3 + $0x50] sm:$0xff]
    %v71 = vld [vmem:[#allocation3 + $0x58] sm:$0xff]
    %v72 = vld [vmem:[#allocation3 + $0x60] sm:$0xff]
    %v73 = vld [vmem:[#allocation3 + $0x68] sm:$0xff]
    %v74 = vld [vmem:[#allocation3 + $0x70] sm:$0xff]
    %v75 = vld [vmem:[#allocation3 + $0x78] sm:$0xff]
    %v76 = vpack.c.bf16 %v61, %v60
    %v77 = vpack.c.bf16 %v63, %v62
    %v78 = vpack.c.bf16 %v65, %v64
    %v79 = vpack.c.bf16 %v67, %v66
    %v80 = vpack.c.bf16 %v69, %v68
    %v81 = vpack.c.bf16 %v71, %v70
    %v82 = vpack.c.bf16 %v73, %v72
    %v83 = vpack.c.bf16 %v75, %v74
    %v84 = vld [vmem:[#allocation5] sm:$0xf]
    %v85 = vld [vmem:[#allocation5 + $0x4] sm:$0xf]
    %v86 = vld [vmem:[#allocation5 + $0x8] sm:$0xf]
    %v87 = vld [vmem:[#allocation5 + $0xc] sm:$0xf]
    %v88 = vld [vmem:[%s2] sm:$0x1]
    %v90 = vperm.slane %v88, 0
    %v96 = vunpack.c.l.b16 %v84
    %v97 = vunpack.c.l.b16 %v85
    %v98 = vunpack.c.l.b16 %v86
    %v99 = vunpack.c.l.b16 %v87
    %v100 = vpack.c.b16 %v97, %v96
    %v101 = vpack.c.b16 %v99, %v98
    %vm104 = vcmask 261120
    %v106 = vsel %vm104, %v76, 0
    %v109 = vsel %vm104, %v77, 0
    %v112 = vsel %vm104, %v78, 0
    %v115 = vsel %vm104, %v79, 0
    %v118 = vsel %vm104, %v80, 0
    %v121 = vsel %vm104, %v81, 0
    %v124 = vsel %vm104, %v82, 0
    %v127 = vsel %vm104, %v83, 0
    %129 = vmatpush.bf16.msra.mxu0 0
    %130 = vmatpush.bf16.msra.mxu0 0
    %131 = vmatpush.bf16.msra.mxu0 0
    %132 = vmatpush.bf16.msra.mxu0 0
    %133 = vmatpush.bf16.msra.mxu0 0
    %134 = vmatpush.bf16.msra.mxu0 0
    %135 = vmatpush.bf16.msra.mxu0 %v101
    %136 = vmatpush.bf16.msra.mxu0 %v100
    %137 = vmatmul.bf16.gmra.mxu0 %v106
    %v138 = vpop.f32.mrf.mxu0
    %v139 = vadd.f32 %v90, %v138
    %v140 = vpop.f32.mrf.mxu0
    %v141 = vadd.f32 %v90, %v140
    %142 = vmatmul.bf16.gmra.mxu0 %v109
    %v143 = vpop.f32.mrf.mxu0
    %v144 = vadd.f32 %v90, %v143
    %v145 = vpop.f32.mrf.mxu0
    %v146 = vadd.f32 %v90, %v145
    %147 = vmatmul.bf16.gmra.mxu0 %v112
    %v148 = vpop.f32.mrf.mxu0
    %v149 = vadd.f32 %v90, %v148
    %v150 = vpop.f32.mrf.mxu0
    %v151 = vadd.f32 %v90, %v150
    %152 = vmatmul.bf16.gmra.mxu0 %v115
    %v153 = vpop.f32.mrf.mxu0
    %v154 = vadd.f32 %v90, %v153
    %v155 = vpop.f32.mrf.mxu0
    %v156 = vadd.f32 %v90, %v155
    %157 = vmatmul.bf16.gmra.mxu0 %v118
    %v158 = vpop.f32.mrf.mxu0
    %v159 = vadd.f32 %v90, %v158
    %v160 = vpop.f32.mrf.mxu0
    %v161 = vadd.f32 %v90, %v160
    %162 = vmatmul.bf16.gmra.mxu0 %v121
    %v163 = vpop.f32.mrf.mxu0
    %v164 = vadd.f32 %v90, %v163
    %v165 = vpop.f32.mrf.mxu0
    %v166 = vadd.f32 %v90, %v165
    %167 = vmatmul.bf16.gmra.mxu0 %v124
    %v168 = vpop.f32.mrf.mxu0
    %v169 = vadd.f32 %v90, %v168
    %v170 = vpop.f32.mrf.mxu0
    %v171 = vadd.f32 %v90, %v170
    %172 = vmatmul.bf16.gmra.mxu0 %v127
    %v173 = vpop.f32.mrf.mxu0
    %v174 = vadd.f32 %v90, %v173
    %v175 = vpop.f32.mrf.mxu0
    %v176 = vadd.f32 %v90, %v175
    %177 = vdwg.mxu0
    %v178 = vmax.f32 %v139, 0.0
    %v179 = vmax.f32 %v141, 0.0
    %v180 = vmax.f32 %v144, 0.0
    %v181 = vmax.f32 %v146, 0.0
    %v182 = vmax.f32 %v149, 0.0
    %v183 = vmax.f32 %v151, 0.0
    %v184 = vmax.f32 %v154, 0.0
    %v185 = vmax.f32 %v156, 0.0
    %v186 = vmax.f32 %v159, 0.0
    %v187 = vmax.f32 %v161, 0.0
    %v188 = vmax.f32 %v164, 0.0
    %v189 = vmax.f32 %v166, 0.0
    %v190 = vmax.f32 %v169, 0.0
    %v191 = vmax.f32 %v171, 0.0
    %v192 = vmax.f32 %v174, 0.0
    %v193 = vmax.f32 %v176, 0.0
    %v194 = vpack.c.bf16 %v179, %v178
    %v195 = vpack.c.bf16 %v181, %v180
    %v196 = vpack.c.bf16 %v183, %v182
    %v197 = vpack.c.bf16 %v185, %v184
    %v198 = vpack.c.bf16 %v187, %v186
    %v199 = vpack.c.bf16 %v189, %v188
    %v200 = vpack.c.bf16 %v191, %v190
    %v201 = vpack.c.bf16 %v193, %v192
    %v202 = vld [vmem:[%s3] sm:$0xf]
    %v203 = vld [vmem:[%s3 + $0x4] sm:$0xf]
    %v204 = vld [vmem:[%s3 + $0x8] sm:$0xf]
    %v205 = vld [vmem:[%s3 + $0xc] sm:$0xf]
    %v206 = vld [vmem:[%s3 + $0x10] sm:$0xf]
    %v207 = vld [vmem:[%s3 + $0x14] sm:$0xf]
    %v208 = vld [vmem:[%s3 + $0x18] sm:$0xf]
    %v209 = vld [vmem:[%s3 + $0x1c] sm:$0xf]
    %v210 = vld [vmem:[%s3 + $0x20] sm:$0xf]
    %v211 = vld [vmem:[%s3 + $0x24] sm:$0xf]
    %v212 = vld [vmem:[%s3 + $0x28] sm:$0xf]
    %v213 = vld [vmem:[%s3 + $0x2c] sm:$0xf]
    %v214 = vld [vmem:[%s3 + $0x30] sm:$0xf]
    %v215 = vld [vmem:[%s3 + $0x34] sm:$0xf]
    %v216 = vld [vmem:[%s3 + $0x38] sm:$0xf]
    %v217 = vld [vmem:[%s3 + $0x3c] sm:$0xf]
    %v218 = vld [vmem:[%s4] sm:$0x1]
    %v220 = vperm.slane %v218, 0
    %v238 = vunpack.c.l.b16 %v202
    %v239 = vunpack.c.l.b16 %v203
    %v240 = vunpack.c.l.b16 %v204
    %v241 = vunpack.c.l.b16 %v205
    %v242 = vunpack.c.l.b16 %v206
    %v243 = vunpack.c.l.b16 %v207
    %v244 = vunpack.c.l.b16 %v208
    %v245 = vunpack.c.l.b16 %v209
    %v246 = vunpack.c.l.b16 %v210
    %v247 = vunpack.c.l.b16 %v211
    %v248 = vunpack.c.l.b16 %v212
    %v249 = vunpack.c.l.b16 %v213
    %v250 = vunpack.c.l.b16 %v214
    %v251 = vunpack.c.l.b16 %v215
    %v252 = vunpack.c.l.b16 %v216
    %v253 = vunpack.c.l.b16 %v217
    %v254 = vpack.c.b16 %v239, %v238
    %v255 = vpack.c.b16 %v241, %v240
    %v256 = vpack.c.b16 %v243, %v242
    %v257 = vpack.c.b16 %v245, %v244
    %v258 = vpack.c.b16 %v247, %v246
    %v259 = vpack.c.b16 %v249, %v248
    %v260 = vpack.c.b16 %v251, %v250
    %v261 = vpack.c.b16 %v253, %v252
    %270 = vmatpush.bf16.msra.mxu0 %v261
    %271 = vmatpush.bf16.msra.mxu0 %v260
    %272 = vmatpush.bf16.msra.mxu0 %v259
    %273 = vmatpush.bf16.msra.mxu0 %v258
    %274 = vmatpush.bf16.msra.mxu0 %v257
    %275 = vmatpush.bf16.msra.mxu0 %v256
    %276 = vmatpush.bf16.msra.mxu0 %v255
    %277 = vmatpush.bf16.msra.mxu0 %v254
    %278 = vmatmul.bf16.gmra.mxu0 %v194
    %v279 = vpop.f32.mrf.mxu0
    %v280 = vadd.f32 %v220, %v279
    %v281 = vpop.f32.mrf.mxu0
    %v282 = vadd.f32 %v220, %v281
    %283 = vmatmul.bf16.gmra.mxu0 %v195
    %v284 = vpop.f32.mrf.mxu0
    %v285 = vadd.f32 %v220, %v284
    %v286 = vpop.f32.mrf.mxu0
    %v287 = vadd.f32 %v220, %v286
    %288 = vmatmul.bf16.gmra.mxu0 %v196
    %v289 = vpop.f32.mrf.mxu0
    %v290 = vadd.f32 %v220, %v289
    %v291 = vpop.f32.mrf.mxu0
    %v292 = vadd.f32 %v220, %v291
    %293 = vmatmul.bf16.gmra.mxu0 %v197
    %v294 = vpop.f32.mrf.mxu0
    %v295 = vadd.f32 %v220, %v294
    %v296 = vpop.f32.mrf.mxu0
    %v297 = vadd.f32 %v220, %v296
    %298 = vmatmul.bf16.gmra.mxu0 %v198
    %v299 = vpop.f32.mrf.mxu0
    %v300 = vadd.f32 %v220, %v299
    %v301 = vpop.f32.mrf.mxu0
    %v302 = vadd.f32 %v220, %v301
    %303 = vmatmul.bf16.gmra.mxu0 %v199
    %v304 = vpop.f32.mrf.mxu0
    %v305 = vadd.f32 %v220, %v304
    %v306 = vpop.f32.mrf.mxu0
    %v307 = vadd.f32 %v220, %v306
    %308 = vmatmul.bf16.gmra.mxu0 %v200
    %v309 = vpop.f32.mrf.mxu0
    %v310 = vadd.f32 %v220, %v309
    %v311 = vpop.f32.mrf.mxu0
    %v312 = vadd.f32 %v220, %v311
    %313 = vmatmul.bf16.gmra.mxu0 %v201
    %v314 = vpop.f32.mrf.mxu0
    %v315 = vadd.f32 %v220, %v314
    %v316 = vpop.f32.mrf.mxu0
    %v317 = vadd.f32 %v220, %v316
    %318 = vdwg.mxu0
    %v319 = vmax.f32 %v280, 0.0
    %v320 = vmax.f32 %v282, 0.0
    %v321 = vmax.f32 %v285, 0.0
    %v322 = vmax.f32 %v287, 0.0
    %v323 = vmax.f32 %v290, 0.0
    %v324 = vmax.f32 %v292, 0.0
    %v325 = vmax.f32 %v295, 0.0
    %v326 = vmax.f32 %v297, 0.0
    %v327 = vmax.f32 %v300, 0.0
    %v328 = vmax.f32 %v302, 0.0
    %v329 = vmax.f32 %v305, 0.0
    %v330 = vmax.f32 %v307, 0.0
    %v331 = vmax.f32 %v310, 0.0
    %v332 = vmax.f32 %v312, 0.0
    %v333 = vmax.f32 %v315, 0.0
    %v334 = vmax.f32 %v317, 0.0
    %v335 = vpack.c.bf16 %v320, %v319
    %v336 = vpack.c.bf16 %v322, %v321
    %v337 = vpack.c.bf16 %v324, %v323
    %v338 = vpack.c.bf16 %v326, %v325
    %v339 = vpack.c.bf16 %v328, %v327
    %v340 = vpack.c.bf16 %v330, %v329
    %v341 = vpack.c.bf16 %v332, %v331
    %v342 = vpack.c.bf16 %v334, %v333
    %v343 = vld [vmem:[%s5] sm:$0xf]
    %v344 = vld [vmem:[%s5 + $0x4] sm:$0xf]
    %v345 = vld [vmem:[%s5 + $0x8] sm:$0xf]
    %v346 = vld [vmem:[%s5 + $0xc] sm:$0xf]
    %v347 = vld [vmem:[%s5 + $0x10] sm:$0xf]
    %v348 = vld [vmem:[%s5 + $0x14] sm:$0xf]
    %v349 = vld [vmem:[%s5 + $0x18] sm:$0xf]
    %v350 = vld [vmem:[%s5 + $0x1c] sm:$0xf]
    %v351 = vld [vmem:[%s5 + $0x20] sm:$0xf]
    %v352 = vld [vmem:[%s5 + $0x24] sm:$0xf]
    %v353 = vld [vmem:[%s5 + $0x28] sm:$0xf]
    %v354 = vld [vmem:[%s5 + $0x2c] sm:$0xf]
    %v355 = vld [vmem:[%s5 + $0x30] sm:$0xf]
    %v356 = vld [vmem:[%s5 + $0x34] sm:$0xf]
    %v357 = vld [vmem:[%s5 + $0x38] sm:$0xf]
    %v358 = vld [vmem:[%s5 + $0x3c] sm:$0xf]
    %s359 = sld [smem:[#allocation2]]
    %v360 = vstv %s359
    %v377 = vunpack.c.l.b16 %v343
    %v378 = vunpack.c.l.b16 %v344
    %v379 = vunpack.c.l.b16 %v345
    %v380 = vunpack.c.l.b16 %v346
    %v381 = vunpack.c.l.b16 %v347
    %v382 = vunpack.c.l.b16 %v348
    %v383 = vunpack.c.l.b16 %v349
    %v384 = vunpack.c.l.b16 %v350
    %v385 = vunpack.c.l.b16 %v351
    %v386 = vunpack.c.l.b16 %v352
    %v387 = vunpack.c.l.b16 %v353
    %v388 = vunpack.c.l.b16 %v354
    %v389 = vunpack.c.l.b16 %v355
    %v390 = vunpack.c.l.b16 %v356
    %v391 = vunpack.c.l.b16 %v357
    %v392 = vunpack.c.l.b16 %v358
    %v393 = vpack.c.b16 %v378, %v377
    %v394 = vpack.c.b16 %v380, %v379
    %v395 = vpack.c.b16 %v382, %v381
    %v396 = vpack.c.b16 %v384, %v383
    %v397 = vpack.c.b16 %v386, %v385
    %v398 = vpack.c.b16 %v388, %v387
    %v399 = vpack.c.b16 %v390, %v389
    %v400 = vpack.c.b16 %v392, %v391
    %409 = vmatpush.bf16.msra.mxu0 %v400
    %410 = vmatpush.bf16.msra.mxu0 %v399
    %411 = vmatpush.bf16.msra.mxu0 %v398
    %412 = vmatpush.bf16.msra.mxu0 %v397
    %413 = vmatpush.bf16.msra.mxu0 %v396
    %414 = vmatpush.bf16.msra.mxu0 %v395
    %415 = vmatpush.bf16.msra.mxu0 %v394
    %416 = vmatpush.bf16.msra.mxu0 %v393
    %417 = vmatmul.bf16.gmra.mxu0 %v335
    %v418 = vpop.f32.mrf.mxu0
    %v419 = vadd.f32 %v360, %v418
    %v420 = vpop.f32.mrf.mxu0
    %v421 = vadd.f32 %v360, %v420
    %422 = vmatmul.bf16.gmra.mxu0 %v336
    %v423 = vpop.f32.mrf.mxu0
    %v424 = vadd.f32 %v360, %v423
    %v425 = vpop.f32.mrf.mxu0
    %v426 = vadd.f32 %v360, %v425
    %427 = vmatmul.bf16.gmra.mxu0 %v337
    %v428 = vpop.f32.mrf.mxu0
    %v429 = vadd.f32 %v360, %v428
    %v430 = vpop.f32.mrf.mxu0
    %v431 = vadd.f32 %v360, %v430
    %432 = vmatmul.bf16.gmra.mxu0 %v338
    %v433 = vpop.f32.mrf.mxu0
    %v434 = vadd.f32 %v360, %v433
    %v435 = vpop.f32.mrf.mxu0
    %v436 = vadd.f32 %v360, %v435
    %437 = vmatmul.bf16.gmra.mxu0 %v339
    %v438 = vpop.f32.mrf.mxu0
    %v439 = vadd.f32 %v360, %v438
    %v440 = vpop.f32.mrf.mxu0
    %v441 = vadd.f32 %v360, %v440
    %442 = vmatmul.bf16.gmra.mxu0 %v340
    %v443 = vpop.f32.mrf.mxu0
    %v444 = vadd.f32 %v360, %v443
    %v445 = vpop.f32.mrf.mxu0
    %v446 = vadd.f32 %v360, %v445
    %447 = vmatmul.bf16.gmra.mxu0 %v341
    %v448 = vpop.f32.mrf.mxu0
    %v449 = vadd.f32 %v360, %v448
    %v450 = vpop.f32.mrf.mxu0
    %v451 = vadd.f32 %v360, %v450
    %452 = vmatmul.bf16.gmra.mxu0 %v342
    %v453 = vpop.f32.mrf.mxu0
    %v454 = vadd.f32 %v360, %v453
    %v455 = vpop.f32.mrf.mxu0
    %v456 = vadd.f32 %v360, %v455
    %457 = vdwg.mxu0
    %vm458 = vcmask 7168
    %459 = vst.msk [vmem:[#allocation7] sm:$0xff] %vm458, %v419
    %460 = vst.msk [vmem:[#allocation7 + $0x8] sm:$0xff] %vm458, %v421
    %461 = vst.msk [vmem:[#allocation7 + $0x10] sm:$0xff] %vm458, %v424
    %462 = vst.msk [vmem:[#allocation7 + $0x18] sm:$0xff] %vm458, %v426
    %463 = vst.msk [vmem:[#allocation7 + $0x20] sm:$0xff] %vm458, %v429
    %464 = vst.msk [vmem:[#allocation7 + $0x28] sm:$0xff] %vm458, %v431
    %465 = vst.msk [vmem:[#allocation7 + $0x30] sm:$0xff] %vm458, %v434
    %466 = vst.msk [vmem:[#allocation7 + $0x38] sm:$0xff] %vm458, %v436
    %467 = vst.msk [vmem:[#allocation7 + $0x40] sm:$0xff] %vm458, %v439
    %468 = vst.msk [vmem:[#allocation7 + $0x48] sm:$0xff] %vm458, %v441
    %469 = vst.msk [vmem:[#allocation7 + $0x50] sm:$0xff] %vm458, %v444
    %470 = vst.msk [vmem:[#allocation7 + $0x58] sm:$0xff] %vm458, %v446
    %471 = vst.msk [vmem:[#allocation7 + $0x60] sm:$0xff] %vm458, %v449
    %472 = vst.msk [vmem:[#allocation7 + $0x68] sm:$0xff] %vm458, %v451
    %473 = vst.msk [vmem:[#allocation7 + $0x70] sm:$0xff] %vm458, %v454
    %474 = vst.msk [vmem:[#allocation7 + $0x78] sm:$0xff] %vm458, %v456
    // Predicated region
    $region38: #{tpu_custom_call.1} parent=1 // pred_check
      _
    $region39: #{tpu_custom_call.1} parent=1 // pred_check_branch
      %476 = sbr.rel (0) target = $region41
    $region40: #{tpu_custom_call.1} parent=1 // pred_region
      // Predicated region
      $region42: #{tpu_custom_call.1} parent=40 // pred_check
        _
      $region43: #{tpu_custom_call.1} parent=40 // pred_check_branch
        %478 = sbr.rel (0) target = $region45
      $region44: #{tpu_custom_call.1} parent=40 // pred_region
        // Predicated region
        $region46: #{tpu_custom_call.1} parent=44 // pred_check
          _
        $region47: #{tpu_custom_call.1} parent=44 // pred_check_branch
          %480 = sbr.rel (0) target = $region49
        $region48: #{tpu_custom_call.1} parent=44 // pred_region
          // Predicated region
          $region61: #{tpu_custom_call.1} parent=48 // pred_check
            _
          $region62: #{tpu_custom_call.1} parent=48 // pred_check_branch
            %496 = sbr.rel (0) target = $region64
          $region63: #{tpu_custom_call.1} parent=48 // pred_region
            loop: start=0, step=1, limit=1
            $region65: #{tpu_custom_call.1} parent=63 // loop_pre_header
              _
            $region66: #{tpu_custom_call.1} parent=63 // loop_header
              %s498 = sphi 0, %s502
              %p499 = scmp.ge.s32.totalorder %s498, 1
              %s503 = sphi [#allocation7], [#allocation7]
              %s504 = sphi %s7, %s7
            $region67: #{tpu_custom_call.1} parent=63 // loop_header_branch
              %501 = sbr.rel (%p499) target = $region71
            $region68: #{tpu_custom_call.1} parent=63 // loop_body
              %v505 = vld [vmem:[%s503] sm:$0xff]
              %506 = vst [vmem:[%s504] sm:$0xff] %v505
            $region69: #{tpu_custom_call.1} parent=63 // loop_footer
              %s502 = sadd.s32 1, %s498
            $region70: #{tpu_custom_call.1} parent=63 // loop_footer_branch
              %497 = sbr.rel target = $region66
            $region71: #{tpu_custom_call.1} parent=63 // loop_exit
              _
          $region64: #{tpu_custom_call.1} parent=48 // pred_fallthru
            _
          // Predicated region
          $region72: #{tpu_custom_call.1} parent=48 // pred_check
            _
          $region73: #{tpu_custom_call.1} parent=48 // pred_check_branch
            %508 = sbr.rel target = $region75
          $region74: #{tpu_custom_call.1} parent=48 // pred_region
            _
          $region75: #{tpu_custom_call.1} parent=48 // pred_fallthru
            _
        $region49: #{tpu_custom_call.1} parent=44 // pred_fallthru
          _
        // Predicated region
        $region50: #{tpu_custom_call.1} parent=44 // pred_check
          _
        $region51: #{tpu_custom_call.1} parent=44 // pred_check_branch
          %482 = sbr.rel target = $region53
        $region52: #{tpu_custom_call.1} parent=44 // pred_region
          %s484 = ssub.s32 256, 1
          loop: start=0, step=1, limit=1
          $region54: #{tpu_custom_call.1} parent=52 // loop_pre_header
            _
          $region55: #{tpu_custom_call.1} parent=52 // loop_header
            %s486 = sphi 0, %s490
            %p487 = scmp.ge.s32.totalorder %s486, 1
            %s491 = sphi [#allocation7], [#allocation7]
            %s492 = sphi %s7, %s7
          $region56: #{tpu_custom_call.1} parent=52 // loop_header_branch
            %489 = sbr.rel (%p487) target = $region60
          $region57: #{tpu_custom_call.1} parent=52 // loop_body
            %v493 = vld [vmem:[%s491] sm:%s484]
            %494 = vst [vmem:[%s492] sm:%s484] %v493
          $region58: #{tpu_custom_call.1} parent=52 // loop_footer
            %s490 = sadd.s32 1, %s486
          $region59: #{tpu_custom_call.1} parent=52 // loop_footer_branch
            %485 = sbr.rel target = $region55
          $region60: #{tpu_custom_call.1} parent=52 // loop_exit
            _
        $region53: #{tpu_custom_call.1} parent=44 // pred_fallthru
          _
      $region45: #{tpu_custom_call.1} parent=40 // pred_fallthru
        _
      %509 = vnop
    $region41: #{tpu_custom_call.1} parent=1 // pred_fallthru
      _
    // Predicated region
    $region76: #{tpu_custom_call.1} parent=1 // pred_check
      _
    $region77: #{tpu_custom_call.1} parent=1 // pred_check_branch
      %511 = sbr.rel (0) target = $region79
    $region78: #{tpu_custom_call.1} parent=1 // pred_region
      _
    $region79: #{tpu_custom_call.1} parent=1 // pred_fallthru
      _
    %512 = vsyncpa [#allocation4], 1
    %513 = vsyncpa [#allocation6], 1

</llo_original>
